<compile_context>
chip_gen: v6e
topology: v6e:2x2x1
jax: 0.10.0
libtpu: 0.0.40
codegen_flags: <defaults>
</compile_context>

<pallas_src>
import functools

import jax
import jax.numpy as jnp
from jax.experimental import pallas as pl
from jax.experimental.pallas import tpu as pltpu


GAMMA = 2.0
NUM_CLASSES = 3
SIZE_AVERAGE = True

_LANE = 128        # lanes per vreg row (batch maps to lanes)
_SUB = 32          # row granularity: multiple of 8 (f32 tiles) and 32 (int8 label tiles)
_ROWS_MAX = 1024   # max (rows,128) rows per grid step -> 128K batch elements / step (~1.5 MiB preds tile)
_N_PAR = 2         # leading "parallel" grid axis: fills both TensorCores on v7x, harmless on v5e/v6e


def _cdiv(a, b):
    return (a + b - 1) // b


def _round_up(x, m):
    return (x + m - 1) // m * m


def _focal_loss_kernel(alpha_ref, preds_ref, labels_ref, out_ref, acc_ref, *, num_classes, gamma):
    """One grid step: preds tile [C, R, 128], labels tile [R, 128] (batch dense on sublanes AND
    lanes).  Accumulates focal terms into a [R, 128] VMEM accumulator; reduces once at finalize."""
    i = pl.program_id(1)

    @pl.when(i == 0)
    def _init():
        acc_ref[...] = jnp.zeros_like(acc_ref)

    labels = labels_ref[...].astype(jnp.int32)                       # [R, 128]

    # Pass 1 (fused): running max over the (tiny, unrolled) class dim + gather of the target
    # logit and alpha via selects.  All operands are dense [R, 128] f32 tiles (pure VPU).
    rows = [preds_ref[k].astype(jnp.float32) for k in range(num_classes)]
    m = rows[0]
    sel = labels == 0
    x_t = jnp.where(sel, rows[0], 0.0)
    a_t = jnp.where(sel, alpha_ref[0], 0.0)
    for k in range(1, num_classes):
        m = jnp.maximum(m, rows[k])
        sel = labels == k
        x_t = jnp.where(sel, rows[k], x_t)
        a_t = jnp.where(sel, alpha_ref[k], a_t)

    # Pass 2: softmax normalizer (only place the rows are revisited).  EUP exps.
    s = jnp.exp(rows[0] - m)
    for k in range(1, num_classes):
        s = s + jnp.exp(rows[k] - m)

    logp_t = (x_t - m) - jnp.log(s)                                  # gathered log-softmax
    p_t = jnp.exp(logp_t)                                            # single gathered exp
    q = 1.0 - p_t
    if float(gamma) == 2.0:
        w = q * q                                                    # static integer power -> VPU muls
    else:
        w = jnp.power(jnp.maximum(q, 0.0), gamma)                    # clamp avoids NaN on roundoff
    # Padded / out-of-range labels hit no select -> a_t == 0 -> exactly zero contribution
    # (pad logits are 0, so logp_t is finite; 0 * finite == 0).
    acc_ref[...] = acc_ref[...] + (-a_t) * w * logp_t

    @pl.when(i == pl.num_programs(1) - 1)
    def _finalize():
        r = acc_ref.shape[0]
        # Single sublane reduction per parallel chunk; output block stays lane-dense [8, 128].
        out_ref[...] = acc_ref[...].reshape(r // 8, 8, _LANE).sum(axis=0)


def focal_loss_pallas(preds, labels, alpha, *, gamma=GAMMA, size_average=SIZE_AVERAGE,
                      rows_per_tile_max=_ROWS_MAX):
    """preds: [B, C] float, labels: [B] int, alpha: [C] float -> scalar float32 loss."""
    B, C = preds.shape
    if preds.dtype == jnp.float64:
        preds = preds.astype(jnp.float32)

    # ---- tile geometry: batch dense on sublanes and lanes ------------------------------------
    nr_raw = _cdiv(B, _LANE)                              # 128-wide batch rows needed
    nt = _cdiv(nr_raw, rows_per_tile_max)                 # number of tiles at max tile size
    n_par = _N_PAR if nt >= _N_PAR else 1                 # use both TCs only when >1 tile
    nt = _round_up(nt, n_par)
    rows = _round_up(_cdiv(nr_raw, nt), _SUB)             # rows per tile (balanced, mult of 32)
    nr_pad = nt * rows
    b_pad = nr_pad * _LANE
    spc = nt // n_par                                     # sequential steps per parallel chunk

    # ---- layout plumbing: one contiguous copy of the real bytes (pad fuses into the transpose) --
    # TODO(synk): produce preds already as [C, B/128, 128] upstream to remove this extra HBM pass.
    preds_3d = jnp.pad(preds.T, ((0, 0), (0, b_pad - B))).reshape(C, nr_pad, _LANE)

    lab_dtype = jnp.int8 if C < 128 else jnp.int32        # int8 labels: 1 byte/element on the wire
    labels_p = jnp.pad(labels.astype(lab_dtype), (0, b_pad - B),
                       constant_values=-1).reshape(nr_pad, _LANE)
    alpha_f = alpha.astype(jnp.float32).reshape(C)        # -> SMEM via scalar prefetch

    kernel = functools.partial(_focal_loss_kernel, num_classes=C, gamma=gamma)

    bytes_accessed = (preds_3d.size * preds_3d.dtype.itemsize
                      + labels_p.size * labels_p.dtype.itemsize
                      + n_par * 8 * _LANE * 4 + C * 4)
    cost = pl.CostEstimate(flops=28 * b_pad,
                           transcendentals=(C + 2) * b_pad,
                           bytes_accessed=bytes_accessed)

    out = pl.pallas_call(
        kernel,
        out_shape=jax.ShapeDtypeStruct((n_par * 8, _LANE), jnp.float32),
        grid_spec=pltpu.PrefetchScalarGridSpec(
            num_scalar_prefetch=1,                                           # alpha -> SMEM
            grid=(n_par, spc),
            in_specs=[
                pl.BlockSpec((C, rows, _LANE), lambda c, i, a: (0, c * spc + i, 0)),  # logits
                pl.BlockSpec((rows, _LANE), lambda c, i, a: (c * spc + i, 0)),        # labels
            ],
            out_specs=pl.BlockSpec((8, _LANE), lambda c, i, a: (c, 0)),      # per-chunk partials
            scratch_shapes=[pltpu.VMEM((rows, _LANE), jnp.float32)],         # vector accumulator
        ),
        compiler_params=pltpu.CompilerParams(
            dimension_semantics=("parallel", "arbitrary"),   # batch split across TCs on v7x
            vmem_limit_bytes=32 * 1024 * 1024,               # ~9 MiB actual need; safe on v5e/v6e/v7x
        ),
        cost_estimate=cost,
    )(alpha_f, preds_3d, labels_p)

    total = jnp.sum(out)                                   # tiny: n_par*8*128 partials
    return total / jnp.float32(B) if size_average else total


def focal_loss_ref(preds, labels, alpha, *, gamma=GAMMA, size_average=SIZE_AVERAGE):
    """Pure-JAX reference mirroring the PyTorch module."""
    logsoft = jax.nn.log_softmax(preds.astype(jnp.float32), axis=1)
    softmax = jnp.exp(logsoft)
    p_t = jnp.take_along_axis(softmax, labels[:, None], axis=1)[:, 0]
    logp_t = jnp.take_along_axis(logsoft, labels[:, None], axis=1)[:, 0]
    alpha_t = alpha.astype(jnp.float32)[labels]
    loss = -alpha_t * (1.0 - p_t) ** gamma * logp_t
    return jnp.mean(loss) if size_average else jnp.sum(loss)


if __name__ == "__main__":
    key = jax.random.PRNGKey(0)
    k_preds, k_labels = jax.random.split(key)

    # Module __init__ with alpha=None -> alpha = ones(num_classes)
    B, C = 8, NUM_CLASSES
    alpha = jnp.ones((C,), dtype=jnp.float32)

    preds = jax.random.normal(k_preds, (B, C), dtype=jnp.float32)
    labels = jax.random.randint(k_labels, (B,), 0, C, dtype=jnp.int32)

    loss = focal_loss_pallas(preds, labels, alpha)
    jax.block_until_ready(loss)
    ref = focal_loss_ref(preds, labels, alpha)
    assert jnp.allclose(loss, ref, atol=1e-5, rtol=1e-4), (loss, ref)

    # Exercise the multi-tile / two-partial-sum / ragged-tail path with a small tile size.
    k2a, k2b = jax.random.split(jax.random.PRNGKey(0))
    B2 = 9000
    preds2 = jax.random.normal(k2a, (B2, C), dtype=jnp.float32)
    labels2 = jax.random.randint(k2b, (B2,), 0, C, dtype=jnp.int32)
    loss2 = focal_loss_pallas(preds2, labels2, alpha, rows_per_tile_max=32)
    jax.block_until_ready(loss2)
    ref2 = focal_loss_ref(preds2, labels2, alpha)
    assert jnp.allclose(loss2, ref2, atol=1e-5, rtol=1e-4), (loss2, ref2)

    print("KERNEL_OK")
</pallas_src>

<mosaic_0001>
module attributes {stable_mosaic.version = 11 : i64} {
  func.func @_focal_loss_kernel(%arg0: i32, %arg1: i32, %arg2: memref<3xf32, #tpu.memory_space<smem>>, %arg3: memref<3x32x128xf32, #tpu.memory_space<vmem>>, %arg4: memref<32x128xi8, #tpu.memory_space<vmem>>, %arg5: memref<8x128xf32, #tpu.memory_space<vmem>>, %arg6: memref<32x128xf32, #tpu.memory_space<vmem>>) attributes {dimension_semantics = [#tpu.dimension_semantics<parallel>, #tpu.dimension_semantics<arbitrary>], iteration_bounds = array<i64: 1, 1>, scalar_prefetch = 1 : i64, scratch_operands = 1 : i64, tpu.core_type = #tpu.core_type<tc>, window_params = [{transform_indices = @transform_0, window_bounds = array<i64: 3, 32, 128>}, {transform_indices = @transform_1, window_bounds = array<i64: 32, 128>}, {transform_indices = @transform_2, window_bounds = array<i64: 8, 128>}]} {
    %c0_i32 = arith.constant 0 : i32
    %0 = arith.cmpi eq, %arg1, %c0_i32 : i32
    %1 = arith.extui %0 : i1 to i32
    %c0_i32_0 = arith.constant 0 : i32
    %2 = arith.cmpi ne, %1, %c0_i32_0 : i32
    scf.if %2 {
      %cst_22 = arith.constant 0.000000e+00 : f32
      %58 = vector.broadcast %cst_22 : f32 to vector<32x128xf32>
      %c0_23 = arith.constant 0 : index
      %c0_24 = arith.constant 0 : index
      %59 = vector.load %arg6[%c0_23, %c0_24] : memref<32x128xf32, #tpu.memory_space<vmem>>, vector<32x128xf32>
      tpu.vector_store %arg6[%c0_23, %c0_24], %58 {strides = array<i32>} : memref<32x128xf32, #tpu.memory_space<vmem>>, vector<32x128xf32>,
    } else {
    }
    %c0 = arith.constant 0 : index
    %c0_1 = arith.constant 0 : index
    %3 = vector.load %arg4[%c0, %c0_1] : memref<32x128xi8, #tpu.memory_space<vmem>>, vector<32x128xi8>
    %4 = arith.extsi %3 : vector<32x128xi8> to vector<32x128xi32>
    %c0_2 = arith.constant 0 : index
    %c0_3 = arith.constant 0 : index
    %c0_4 = arith.constant 0 : index
    %5 = vector.load %arg3[%c0_2, %c0_3, %c0_4] : memref<3x32x128xf32, #tpu.memory_space<vmem>>, vector<1x32x128xf32>
    %6 = vector.shape_cast %5 : vector<1x32x128xf32> to vector<32x128xf32>
    %c1 = arith.constant 1 : index
    %c0_5 = arith.constant 0 : index
    %c0_6 = arith.constant 0 : index
    %7 = vector.load %arg3[%c1, %c0_5, %c0_6] : memref<3x32x128xf32, #tpu.memory_space<vmem>>, vector<1x32x128xf32>
    %8 = vector.shape_cast %7 : vector<1x32x128xf32> to vector<32x128xf32>
    %c2 = arith.constant 2 : index
    %c0_7 = arith.constant 0 : index
    %c0_8 = arith.constant 0 : index
    %9 = vector.load %arg3[%c2, %c0_7, %c0_8] : memref<3x32x128xf32, #tpu.memory_space<vmem>>, vector<1x32x128xf32>
    %10 = vector.shape_cast %9 : vector<1x32x128xf32> to vector<32x128xf32>
    %c0_i32_9 = arith.constant 0 : i32
    %11 = vector.broadcast %c0_i32_9 : i32 to vector<32x128xi32>
    %12 = arith.cmpi eq, %4, %11 : vector<32x128xi32>
    %cst = arith.constant 0.000000e+00 : f32
    %13 = vector.broadcast %cst : f32 to vector<32x128xf32>
    %14 = arith.select %12, %6, %13 : vector<32x128xi1>, vector<32x128xf32>
    %c0_10 = arith.constant 0 : index
    %15 = memref.load %arg2[%c0_10] : memref<3xf32, #tpu.memory_space<smem>>
    %cst_11 = arith.constant 0.000000e+00 : f32
    %16 = vector.broadcast %15 : f32 to vector<32x128xf32>
    %17 = vector.broadcast %cst_11 : f32 to vector<32x128xf32>
    %18 = arith.select %12, %16, %17 : vector<32x128xi1>, vector<32x128xf32>
    %19 = arith.maximumf %6, %8 : vector<32x128xf32>
    %c1_i32 = arith.constant 1 : i32
    %20 = vector.broadcast %c1_i32 : i32 to vector<32x128xi32>
    %21 = arith.cmpi eq, %4, %20 : vector<32x128xi32>
    %22 = arith.select %21, %8, %14 : vector<32x128xi1>, vector<32x128xf32>
    %c1_12 = arith.constant 1 : index
    %23 = memref.load %arg2[%c1_12] : memref<3xf32, #tpu.memory_space<smem>>
    %24 = vector.broadcast %23 : f32 to vector<32x128xf32>
    %25 = arith.select %21, %24, %18 : vector<32x128xi1>, vector<32x128xf32>
    %26 = arith.maximumf %19, %10 : vector<32x128xf32>
    %c2_i32 = arith.constant 2 : i32
    %27 = vector.broadcast %c2_i32 : i32 to vector<32x128xi32>
    %28 = arith.cmpi eq, %4, %27 : vector<32x128xi32>
    %29 = arith.select %28, %10, %22 : vector<32x128xi1>, vector<32x128xf32>
    %c2_13 = arith.constant 2 : index
    %30 = memref.load %arg2[%c2_13] : memref<3xf32, #tpu.memory_space<smem>>
    %31 = vector.broadcast %30 : f32 to vector<32x128xf32>
    %32 = arith.select %28, %31, %25 : vector<32x128xi1>, vector<32x128xf32>
    %33 = arith.subf %6, %26 : vector<32x128xf32>
    %34 = math.exp %33 : vector<32x128xf32>
    %35 = arith.subf %8, %26 : vector<32x128xf32>
    %36 = math.exp %35 : vector<32x128xf32>
    %37 = arith.addf %34, %36 : vector<32x128xf32>
    %38 = arith.subf %10, %26 : vector<32x128xf32>
    %39 = math.exp %38 : vector<32x128xf32>
    %40 = arith.addf %37, %39 : vector<32x128xf32>
    %41 = arith.subf %29, %26 : vector<32x128xf32>
    %42 = math.log %40 : vector<32x128xf32>
    %43 = arith.subf %41, %42 : vector<32x128xf32>
    %44 = math.exp %43 : vector<32x128xf32>
    %cst_14 = arith.constant 1.000000e+00 : f32
    %45 = vector.broadcast %cst_14 : f32 to vector<32x128xf32>
    %46 = arith.subf %45, %44 : vector<32x128xf32>
    %47 = arith.mulf %46, %46 : vector<32x128xf32>
    %c0_15 = arith.constant 0 : index
    %c0_16 = arith.constant 0 : index
    %48 = vector.load %arg6[%c0_15, %c0_16] : memref<32x128xf32, #tpu.memory_space<vmem>>, vector<32x128xf32>
    %cst_17 = arith.constant 0.000000e+00 : f32
    %49 = vector.broadcast %cst_17 : f32 to vector<32x128xf32>
    %50 = arith.subf %49, %32 : vector<32x128xf32>
    %51 = arith.mulf %50, %47 : vector<32x128xf32>
    %52 = arith.mulf %51, %43 : vector<32x128xf32>
    %53 = arith.addf %48, %52 : vector<32x128xf32>
    %c0_18 = arith.constant 0 : index
    %c0_19 = arith.constant 0 : index
    %54 = vector.load %arg6[%c0_18, %c0_19] : memref<32x128xf32, #tpu.memory_space<vmem>>, vector<32x128xf32>
    tpu.vector_store %arg6[%c0_18, %c0_19], %53 {strides = array<i32>} : memref<32x128xf32, #tpu.memory_space<vmem>>, vector<32x128xf32>,
    %c0_i32_20 = arith.constant 0 : i32
    %55 = arith.cmpi eq, %arg1, %c0_i32_20 : i32
    %56 = arith.extui %55 : i1 to i32
    %c0_i32_21 = arith.constant 0 : i32
    %57 = arith.cmpi ne, %56, %c0_i32_21 : i32
    scf.if %57 {
      %c0_22 = arith.constant 0 : index
      %c0_23 = arith.constant 0 : index
      %58 = vector.load %arg6[%c0_22, %c0_23] : memref<32x128xf32, #tpu.memory_space<vmem>>, vector<32x128xf32>
      %59 = vector.shape_cast %58 : vector<32x128xf32> to vector<4x8x128xf32>
      %cst_24 = arith.constant dense<0.000000e+00> : vector<8x128xf32>
      %60 = vector.multi_reduction <add>, %59, %cst_24 [0] : vector<4x8x128xf32> to vector<8x128xf32>
      %c0_25 = arith.constant 0 : index
      %c0_26 = arith.constant 0 : index
      %61 = vector.load %arg5[%c0_25, %c0_26] : memref<8x128xf32, #tpu.memory_space<vmem>>, vector<8x128xf32>
      tpu.vector_store %arg5[%c0_25, %c0_26], %60 {strides = array<i32>} : memref<8x128xf32, #tpu.memory_space<vmem>>, vector<8x128xf32>,
    } else {
    }
    return
  }
  func.func @transform_0(%arg0: i32, %arg1: i32, %arg2: memref<3xf32, #tpu.memory_space<smem>>) -> (i32, i32, i32) {
    %c1_i32 = arith.constant 1 : i32
    %0 = arith.muli %arg0, %c1_i32 : i32
    %1 = arith.addi %0, %arg1 : i32
    %c0_i32 = arith.constant 0 : i32
    %c0_i32_0 = arith.constant 0 : i32
    %c0_i32_1 = arith.constant 0 : i32
    return %c0_i32, %1, %c0_i32_0 : i32, i32, i32
  }
  func.func @transform_1(%arg0: i32, %arg1: i32, %arg2: memref<3xf32, #tpu.memory_space<smem>>) -> (i32, i32) {
    %c1_i32 = arith.constant 1 : i32
    %0 = arith.muli %arg0, %c1_i32 : i32
    %1 = arith.addi %0, %arg1 : i32
    %c0_i32 = arith.constant 0 : i32
    %c0_i32_0 = arith.constant 0 : i32
    return %1, %c0_i32 : i32, i32
  }
  func.func @transform_2(%arg0: i32, %arg1: i32, %arg2: memref<3xf32, #tpu.memory_space<smem>>) -> (i32, i32) {
    %c0_i32 = arith.constant 0 : i32
    %c0_i32_0 = arith.constant 0 : i32
    return %arg0, %c0_i32 : i32, i32
  }
}

</mosaic_0001>

<llo_original>
// kernel: tpu_custom_call.1
$region0: #{tpu_custom_call.1}
  #allocation0 [shape = 'u32[]', space=smem, size = 0x4, offset = 0x4, fixed_abs, tag = 'smem constant byte address 0x4 - core index']
  #allocation1 [shape = 'u32[144,128]{1,0:T(1,128)}', space=vmem, size = 0x12000, scoped, tag = 'internal scratch']
  #allocation2 [shape = 'f32[32,128]{1,0:T(8,128)}', space=vmem, size = 0x4000, scoped, tag = 'scratch operand']
  #allocation3 [shape = 's32[1]{0}', space=sflag, size = 0x4, scoped, tag = 'scoped memory for tpu_custom_call.1']
  #allocation4 [shape = 'u8[512]{0}', space=smem, size = 0x200, scoped, tag = 'prefetched SMEM operand 0']
  %s0 = inlined_call_operand.hbm [shape: f32[3], index: 0, kind: input, shape index: {}]
  %s1 = inlined_call_operand.hbm [shape: f32[3,32,128], index: 1, kind: input, shape index: {}]
  %s2 = inlined_call_operand.hbm [shape: s8[32,128], index: 2, kind: input, shape index: {}]
  %s3 = inlined_call_operand.hbm [shape: f32[8,128], index: 3, kind: output, shape index: {}]
  %s4 = sld [smem:[#allocation0]]
  $region34: #{tpu_custom_call.1} parent=0
    _
  %s6 = ssub.s32 1, %s4
  %s7 = scalar_select 0, %s6, %s4
  %9 = dma.hbm_to_smem %s0, 16, [#allocation4], [#allocation3]
  %10 = dma.done [#allocation3], 16
  %11 = sfence
  $region1: #{tpu_custom_call.1} parent=0
    #allocation5 [shape = 'u8[49152]{0}', space=vmem, size = 0xc000, scoped, tag = 'input window, operand 1, single buffered']
    #allocation6 [shape = 's32[1]{0}', space=sflag, size = 0x4, scoped, tag = 'scoped memory for tpu_custom_call.1']
    #allocation7 [shape = 's32[1]{0}', space=sflag, size = 0x4, scoped, tag = 'scoped memory for tpu_custom_call.1']
    #allocation8 [shape = 'u8[4096]{0}', space=vmem, size = 0x1000, scoped, tag = 'input window, operand 2, single buffered']
    #allocation9 [shape = 's32[1]{0}', space=sflag, size = 0x4, scoped, tag = 'scoped memory for tpu_custom_call.1']
    #allocation10 [shape = 'u8[4096]{0}', space=vmem, size = 0x1000, scoped, tag = 'output window, operand 0, single buffered']
    %12 = vsyncpa [#allocation6], 0
    %13 = vsyncpa [#allocation9], 0
    %14 = vsyncpa [#allocation7], 0
    // Predicated region
    $region2: #{tpu_custom_call.1} parent=1 // pred_check
      _
    $region3: #{tpu_custom_call.1} parent=1 // pred_check_branch
      %16 = sbr.rel (0) target = $region5
    $region4: #{tpu_custom_call.1} parent=1 // pred_region
      %s17 = sadd.s32 0, 0
      %s18 = smul.u32 4, %s17
      %s20 = ssub.s32 1536, 1536
      %21 = vsyncadd [#allocation6], %s20
      %s22 = smul.addr %s18, 128
      %s23 = scalar_lea.hbm %s1, %s22
      %s24 = sshll.u32 [#allocation5], 4
      %s25 = int_to_ptr.vmem [resolvable:$true] %s24
      %30 = dma.hbm_to_vmem [thread:$0]  %s23, 1536, %s25, [#allocation6], 128, 128, 8
    $region5: #{tpu_custom_call.1} parent=1 // pred_fallthru
      _
    // Predicated region
    $region6: #{tpu_custom_call.1} parent=1 // pred_check
      _
    $region7: #{tpu_custom_call.1} parent=1 // pred_check_branch
      %32 = sbr.rel (0) target = $region9
    $region8: #{tpu_custom_call.1} parent=1 // pred_region
      %s33 = sadd.s32 0, 0
      %s35 = ssub.s32 128, 128
      %36 = vsyncadd [#allocation9], %s35
      %s37 = smul.addr %s33, 128
      %s38 = scalar_lea.hbm %s2, %s37
      %s40 = sshll.u32 [#allocation8], 4
      %s41 = int_to_ptr.vmem [resolvable:$true] %s40
      %43 = dma.hbm_to_vmem [thread:$0]  %s38, 128, %s41, [#allocation9]
    $region9: #{tpu_custom_call.1} parent=1 // pred_fallthru
      _
    // Predicated region
    $region10: #{tpu_custom_call.1} parent=1 // pred_check
      _
    $region11: #{tpu_custom_call.1} parent=1 // pred_check_branch
      %45 = sbr.rel (0) target = $region13
    $region12: #{tpu_custom_call.1} parent=1 // pred_region
      %46 = dma.done [#allocation6], 1536
    $region13: #{tpu_custom_call.1} parent=1 // pred_fallthru
      _
    // Predicated region
    $region14: #{tpu_custom_call.1} parent=1 // pred_check
      _
    $region15: #{tpu_custom_call.1} parent=1 // pred_check_branch
      %48 = sbr.rel (0) target = $region17
    $region16: #{tpu_custom_call.1} parent=1 // pred_region
      %49 = dma.done [#allocation9], 128
    $region17: #{tpu_custom_call.1} parent=1 // pred_fallthru
      _
    %s50 = sadd.s32 0, 0
    %s51 = smul.u32 4, %s50
    %s52 = sadd.s32 0, 0
    %p53 = scmp.eq.s32.totalorder 0, 0
    // Predicated region
    $region18: #{tpu_custom_call.1} parent=1 // pred_check
      %p54 = pneg %p53
    $region19: #{tpu_custom_call.1} parent=1 // pred_check_branch
      %56 = sbr.rel (%p54) target = $region21
    $region20: #{tpu_custom_call.1} parent=1 // pred_region
      %57 = vst [vmem:[#allocation2] sm:$0xff] 0.0
      %58 = vst [vmem:[#allocation2 + $0x8] sm:$0xff] 0.0
      %59 = vst [vmem:[#allocation2 + $0x10] sm:$0xff] 0.0
      %60 = vst [vmem:[#allocation2 + $0x18] sm:$0xff] 0.0
    $region21: #{tpu_custom_call.1} parent=1 // pred_fallthru
      _
    %v61 = vld [vmem:[#allocation8] sm:$0xff]
    %v62 = vunpack.c.0.s8 %v61
    %v63 = vunpack.c.1.s8 %v61
    %v64 = vunpack.c.2.s8 %v61
    %v65 = vunpack.c.3.s8 %v61
    %v66 = vld [vmem:[#allocation5] sm:$0xff]
    %v67 = vld [vmem:[#allocation5 + $0x8] sm:$0xff]
    %v68 = vld [vmem:[#allocation5 + $0x10] sm:$0xff]
    %v69 = vld [vmem:[#allocation5 + $0x18] sm:$0xff]
    %s70 = scalar_lea.vmem [#allocation5], 32
    %v71 = vld [vmem:[%s70] sm:$0xff]
    %v72 = vld [vmem:[%s70 + $0x8] sm:$0xff]
    %v73 = vld [vmem:[%s70 + $0x10] sm:$0xff]
    %v74 = vld [vmem:[%s70 + $0x18] sm:$0xff]
    %s75 = scalar_lea.vmem [#allocation5], 64
    %v76 = vld [vmem:[%s75] sm:$0xff]
    %v77 = vld [vmem:[%s75 + $0x8] sm:$0xff]
    %v78 = vld [vmem:[%s75 + $0x10] sm:$0xff]
    %v79 = vld [vmem:[%s75 + $0x18] sm:$0xff]
    %vm80 = vcmp.eq.s32.totalorder %v62, 0
    %vm81 = vcmp.eq.s32.totalorder %v63, 0
    %vm82 = vcmp.eq.s32.totalorder %v64, 0
    %vm83 = vcmp.eq.s32.totalorder %v65, 0
    %v84 = vsel %vm80, %v66, 0.0
    %v85 = vsel %vm81, %v67, 0.0
    %v86 = vsel %vm82, %v68, 0.0
    %v87 = vsel %vm83, %v69, 0.0
    %s88 = sld [smem:[#allocation4]]
    %v89 = vstv %s88
    %v90 = vsel %vm80, %v89, 0.0
    %v91 = vsel %vm81, %v89, 0.0
    %v92 = vsel %vm82, %v89, 0.0
    %v93 = vsel %vm83, %v89, 0.0
    %v94 = vmax.f32 %v66, %v71
    %v95 = vmax.f32 %v67, %v72
    %v96 = vmax.f32 %v68, %v73
    %v97 = vmax.f32 %v69, %v74
    %vm98 = vcmp.eq.s32.totalorder %v62, 1
    %vm99 = vcmp.eq.s32.totalorder %v63, 1
    %vm100 = vcmp.eq.s32.totalorder %v64, 1
    %vm101 = vcmp.eq.s32.totalorder %v65, 1
    %v102 = vsel %vm98, %v71, %v84
    %v103 = vsel %vm99, %v72, %v85
    %v104 = vsel %vm100, %v73, %v86
    %v105 = vsel %vm101, %v74, %v87
    %s106 = sld [smem:[#allocation4 + $0x1]]
    %v107 = vstv %s106
    %v108 = vsel %vm98, %v107, %v90
    %v109 = vsel %vm99, %v107, %v91
    %v110 = vsel %vm100, %v107, %v92
    %v111 = vsel %vm101, %v107, %v93
    %v112 = vmax.f32 %v94, %v76
    %v113 = vmax.f32 %v95, %v77
    %v114 = vmax.f32 %v96, %v78
    %v115 = vmax.f32 %v97, %v79
    %vm116 = vcmp.eq.s32.totalorder %v62, 2
    %vm117 = vcmp.eq.s32.totalorder %v63, 2
    %vm118 = vcmp.eq.s32.totalorder %v64, 2
    %vm119 = vcmp.eq.s32.totalorder %v65, 2
    %v120 = vsel %vm116, %v76, %v102
    %v121 = vsel %vm117, %v77, %v103
    %v122 = vsel %vm118, %v78, %v104
    %v123 = vsel %vm119, %v79, %v105
    %s124 = sld [smem:[#allocation4 + $0x2]]
    %v125 = vstv %s124
    %v126 = vsel %vm116, %v125, %v108
    %v127 = vsel %vm117, %v125, %v109
    %v128 = vsel %vm118, %v125, %v110
    %v129 = vsel %vm119, %v125, %v111
    %v130 = vsub.f32 %v66, %v112
    %v131 = vsub.f32 %v67, %v113
    %v132 = vsub.f32 %v68, %v114
    %v133 = vsub.f32 %v69, %v115
    %v134 = vmul.f32 %v130, 1.442695
    %v135 = vpow.pop %v134
    %v136 = vmul.f32 %v131, 1.442695
    %v137 = vpow.pop %v136
    %v138 = vmul.f32 %v132, 1.442695
    %v139 = vpow.pop %v138
    %v140 = vmul.f32 %v133, 1.442695
    %v141 = vpow.pop %v140
    %v142 = vsub.f32 %v71, %v112
    %v143 = vsub.f32 %v72, %v113
    %v144 = vsub.f32 %v73, %v114
    %v145 = vsub.f32 %v74, %v115
    %v146 = vmul.f32 %v142, 1.442695
    %v147 = vpow.pop %v146
    %v148 = vmul.f32 %v143, 1.442695
    %v149 = vpow.pop %v148
    %v150 = vmul.f32 %v144, 1.442695
    %v151 = vpow.pop %v150
    %v152 = vmul.f32 %v145, 1.442695
    %v153 = vpow.pop %v152
    %v154 = vadd.f32 %v135, %v147
    %v155 = vadd.f32 %v137, %v149
    %v156 = vadd.f32 %v139, %v151
    %v157 = vadd.f32 %v141, %v153
    %v158 = vsub.f32 %v76, %v112
    %v159 = vsub.f32 %v77, %v113
    %v160 = vsub.f32 %v78, %v114
    %v161 = vsub.f32 %v79, %v115
    %v162 = vmul.f32 %v158, 1.442695
    %v163 = vpow.pop %v162
    %v164 = vmul.f32 %v159, 1.442695
    %v165 = vpow.pop %v164
    %v166 = vmul.f32 %v160, 1.442695
    %v167 = vpow.pop %v166
    %v168 = vmul.f32 %v161, 1.442695
    %v169 = vpow.pop %v168
    %v170 = vadd.f32 %v154, %v163
    %v171 = vadd.f32 %v155, %v165
    %v172 = vadd.f32 %v156, %v167
    %v173 = vadd.f32 %v157, %v169
    %v174 = vsub.f32 %v120, %v112
    %v175 = vsub.f32 %v121, %v113
    %v176 = vsub.f32 %v122, %v114
    %v177 = vsub.f32 %v123, %v115
    %v178 = vlog2.pop %v170
    %v179 = vmul.f32 %v178, 0.6931472
    %v180 = vlog2.pop %v171
    %v181 = vmul.f32 %v180, 0.6931472
    %v182 = vlog2.pop %v172
    %v183 = vmul.f32 %v182, 0.6931472
    %v184 = vlog2.pop %v173
    %v185 = vmul.f32 %v184, 0.6931472
    %v186 = vsub.f32 %v174, %v179
    %v187 = vsub.f32 %v175, %v181
    %v188 = vsub.f32 %v176, %v183
    %v189 = vsub.f32 %v177, %v185
    %v190 = vmul.f32 %v186, 1.442695
    %v191 = vpow.pop %v190
    %v192 = vmul.f32 %v187, 1.442695
    %v193 = vpow.pop %v192
    %v194 = vmul.f32 %v188, 1.442695
    %v195 = vpow.pop %v194
    %v196 = vmul.f32 %v189, 1.442695
    %v197 = vpow.pop %v196
    %v198 = vsub.f32 1.0, %v191
    %v199 = vsub.f32 1.0, %v193
    %v200 = vsub.f32 1.0, %v195
    %v201 = vsub.f32 1.0, %v197
    %v202 = vmul.f32 %v198, %v198
    %v203 = vmul.f32 %v199, %v199
    %v204 = vmul.f32 %v200, %v200
    %v205 = vmul.f32 %v201, %v201
    %v206 = vld [vmem:[#allocation2] sm:$0xff]
    %v207 = vld [vmem:[#allocation2 + $0x8] sm:$0xff]
    %v208 = vld [vmem:[#allocation2 + $0x10] sm:$0xff]
    %v209 = vld [vmem:[#allocation2 + $0x18] sm:$0xff]
    %v210 = vsub.f32 0.0, %v126
    %v211 = vsub.f32 0.0, %v127
    %v212 = vsub.f32 0.0, %v128
    %v213 = vsub.f32 0.0, %v129
    %v214 = vmul.f32 %v210, %v202
    %v215 = vmul.f32 %v211, %v203
    %v216 = vmul.f32 %v212, %v204
    %v217 = vmul.f32 %v213, %v205
    %v218 = vmul.f32 %v214, %v186
    %v219 = vmul.f32 %v215, %v187
    %v220 = vmul.f32 %v216, %v188
    %v221 = vmul.f32 %v217, %v189
    %v222 = vadd.f32 %v206, %v218
    %v223 = vadd.f32 %v207, %v219
    %v224 = vadd.f32 %v208, %v220
    %v225 = vadd.f32 %v209, %v221
    %226 = vst [vmem:[#allocation2] sm:$0xff] %v222
    %227 = vst [vmem:[#allocation2 + $0x8] sm:$0xff] %v223
    %228 = vst [vmem:[#allocation2 + $0x10] sm:$0xff] %v224
    %229 = vst [vmem:[#allocation2 + $0x18] sm:$0xff] %v225
    // Predicated region
    $region22: #{tpu_custom_call.1} parent=1 // pred_check
      %p230 = pneg %p53
    $region23: #{tpu_custom_call.1} parent=1 // pred_check_branch
      %232 = sbr.rel (%p230) target = $region25
    $region24: #{tpu_custom_call.1} parent=1 // pred_region
      %v233 = vld [vmem:[#allocation2] sm:$0xff]
      %v234 = vld [vmem:[#allocation2 + $0x8] sm:$0xff]
      %v235 = vld [vmem:[#allocation2 + $0x10] sm:$0xff]
      %v236 = vld [vmem:[#allocation2 + $0x18] sm:$0xff]
      %v237 = vadd.f32 %v233, %v234
      %v238 = vadd.f32 %v237, %v235
      %v239 = vadd.f32 %v238, %v236
      %240 = vst [vmem:[#allocation10] sm:$0xff] %v239
    $region25: #{tpu_custom_call.1} parent=1 // pred_fallthru
      _
    // Predicated region
    $region26: #{tpu_custom_call.1} parent=1 // pred_check
      _
    $region27: #{tpu_custom_call.1} parent=1 // pred_check_branch
      %242 = sbr.rel (0) target = $region29
    $region28: #{tpu_custom_call.1} parent=1 // pred_region
      %s244 = ssub.s32 128, 128
      %245 = vsyncadd [#allocation7], %s244
      %s247 = sshll.u32 [#allocation10], 4
      %s248 = int_to_ptr.vmem [resolvable:$true] %s247
      %250 = dma.vmem_to_hbm [thread:$0]  %s248, 128, %s3, [#allocation7]
    $region29: #{tpu_custom_call.1} parent=1 // pred_fallthru
      _
    // Predicated region
    $region30: #{tpu_custom_call.1} parent=1 // pred_check
      _
    $region31: #{tpu_custom_call.1} parent=1 // pred_check_branch
      %252 = sbr.rel (0) target = $region33
    $region32: #{tpu_custom_call.1} parent=1 // pred_region
      %253 = dma.done [#allocation7], 128
    $region33: #{tpu_custom_call.1} parent=1 // pred_fallthru
      _
    %254 = vsyncpa [#allocation6], 1
    %255 = vsyncpa [#allocation9], 1
    %256 = vsyncpa [#allocation7], 1

</llo_original>
